<compile_context>
chip_gen: v6e
topology: v6e:2x2x1
jax: 0.10.0
libtpu: 0.0.40
codegen_flags: <defaults>
</compile_context>

<pallas_src>
import functools

import jax
import jax.numpy as jnp
from jax import lax
from jax.experimental import pallas as pl
from jax.experimental.pallas import tpu as pltpu


def _round_up(x, m):
    return (x + m - 1) // m * m


def _tpu_defaults():
    """Per-generation (TM preference, VMEM budget, elementwise dtype, #TCs)."""
    try:
        kind = jax.devices()[0].device_kind.lower()
    except Exception:
        kind = ""
    if "v5" in kind:
        # v5e/v5p: 128-wide MXU M-tile, no bf16 VPU/EUP, 128 MiB VMEM, 1 TC.
        return 128, 100 << 20, jnp.float32, 1
    if "v6" in kind:
        # v6e: 256x256 MXU, bf16 VPU/EUP, 128 MiB VMEM, 1 TC.
        return 256, 100 << 20, jnp.bfloat16, 1
    if "v7" in kind:
        # v7x: 256x256 MXU, bf16 VPU/EUP, 64 MiB VMEM per TC, 2 TCs.
        return 256, 44 << 20, jnp.bfloat16, 2
    # Unknown generation: conservative settings that are safe everywhere.
    return 128, 44 << 20, jnp.float32, 1


def _vmem_estimate(tm, n, d, compute_itemsize):
    """Rough per-step VMEM footprint used to size TM against the budget."""
    tile_tmp = tm * n * (4 + 3 * compute_itemsize)   # f32 sim + compute-dtype temps
    streamed = 2 * (tm * d * 2 + tm * 4 + tm * 4)    # dbl-buffered anchors/labels/out
    resident = d * n * 2 + max(n, 128) * 4           # single-buffered positives/labels
    return tile_tmp + streamed + resident + (2 << 20)


def _supcon_tile_kernel(a_ref, bt_ref, lrow_ref, lcol_ref, out_ref, *,
                        compute_dtype):
    # Cosine similarity / temperature on the MXU: inv_temp is already folded
    # into the pre-normalized bf16 anchor rows, and the resident positives are
    # pre-transposed to (D, N), so this is a plain (TM,D)x(D,N) contraction
    # with an f32 accumulator and no per-iteration relayout.
    z = lax.dot_general(
        a_ref[...], bt_ref[...],
        dimension_numbers=(((1,), (0,)), ((), ())),
        preferred_element_type=jnp.float32)                         # (TM, N) f32

    # Positive mask built in-kernel from labels; kept as bool for selects.
    pos = lrow_ref[...] == lcol_ref[...]                            # (TM, N) bool

    # Per-row max shift: exact for dist/(dist+denom) and overflow-safe.
    m = jnp.max(z, axis=1, keepdims=True)                           # (TM, 1)
    zm = (z - m).astype(compute_dtype)                              # (TM, N)
    e = jnp.exp(zm)                                                 # (TM, N)

    # denom = sum of exp over NEGATIVE columns only (single masked reduction).
    denom = jnp.sum(jnp.where(pos, 0.0, e), axis=1, keepdims=True,
                    dtype=jnp.float32)                              # (TM, 1)

    # log(dist / (dist + denom)) == zm - log(exp(zm) + denom)   (exact rewrite)
    log_term = zm - jnp.log(e + denom.astype(compute_dtype))        # (TM, N)

    # Select-then-reduce over positive columns only.  The select (not a
    # multiply) also discards any inf produced at fully-underflowed negative
    # columns, so no 0 * inf NaN can poison the row sum.
    out_ref[...] = jnp.sum(jnp.where(pos, log_term, 0.0), axis=1,
                           keepdims=True, dtype=jnp.float32)        # (TM, 1)


def supcon_loss(anchors, positives, labels, temperature=1.0, eps=1e-8):
    # eps is unused in the reference forward pass; kept for signature parity.
    del eps
    anchors = anchors.astype(jnp.float32)
    positives = positives.astype(jnp.float32)
    labels = labels.astype(jnp.int32)

    n, d = anchors.shape
    inv_temp = 1.0 / float(temperature)

    tm_pref, vmem_budget, compute_dtype, n_cores = _tpu_defaults()
    csz = jnp.dtype(compute_dtype).itemsize

    # Pick the row tile: prefer the MXU-native TM for this generation, then
    # shrink until the per-step footprint fits the per-generation VMEM budget
    # (instead of clamping vmem_limit below the real footprint).
    tm = min(tm_pref, _round_up(n, 8))
    while tm > 8 and _vmem_estimate(tm, n, d, csz) > vmem_budget:
        tm = max(8, tm // 2)
    # On 2-TC chips (v7x) avoid a single-tile grid: split the batch so the
    # "parallel" row axis spans both TensorCores.
    if n_cores > 1 and tm >= n and n > 8 * n_cores:
        tm = max(8, _round_up(-(-n // n_cores), 8))
    # TODO(synk): for very large N (where the resident (D, N) positives or the
    # (TM, N) temporaries no longer fit VMEM even at TM=8) add a column-block
    # grid axis with a two-pass max/denom -> log-term scheme.

    n_pad = _round_up(n, tm)
    num_tiles = n_pad // tm
    pad = n_pad - n

    # One-time glue outside the hot loop:
    #   * anchors L2-normalized with inv_temp folded in, cast to bf16 (streamed)
    #   * positives L2-normalized, cast to bf16 and pre-transposed to (D, N) so
    #     the MXU RHS is already in (K-sublane, N-lane) orientation
    #   * -1 / count_i per row (applied in the wrapper epilogue)
    a_bf = (anchors *
            (lax.rsqrt(jnp.sum(anchors * anchors, axis=1, keepdims=True))
             * inv_temp)).astype(jnp.bfloat16)                        # (N, D)
    bt_bf = (positives *
             lax.rsqrt(jnp.sum(positives * positives, axis=1, keepdims=True))
             ).astype(jnp.bfloat16).T                                 # (D, N)
    counts = jnp.sum((labels[:, None] == labels[None, :]).astype(jnp.float32),
                     axis=1)                                          # (N,)
    neg_inv_count = -1.0 / counts                                     # (N,)

    # Pad anchor rows to a multiple of TM with zeros (zero rows give z == 0,
    # so their kernel output stays finite).  NOTE: padded rows reuse label 0
    # (jnp.pad default) and therefore alias real label-0 columns in the mask;
    # this is harmless only because their weight below is padded to 0.
    a_p = jnp.pad(a_bf, ((0, pad), (0, 0)))
    labels_row = jnp.pad(labels, (0, pad)).reshape(n_pad, 1)
    labels_col = labels.reshape(1, n)
    neg_inv_p = jnp.pad(neg_inv_count, (0, pad))                      # (n_pad,)

    vmem_limit = int(min(max(_vmem_estimate(tm, n, d, csz), 16 << 20),
                         128 << 20))

    kernel = functools.partial(_supcon_tile_kernel, compute_dtype=compute_dtype)
    per_row = pl.pallas_call(
        kernel,
        grid=(num_tiles,),
        out_shape=jax.ShapeDtypeStruct((n_pad, 1), jnp.float32),
        in_specs=[
            # Streamed bf16 anchor row tile (double-buffered by default).
            pl.BlockSpec((tm, d), lambda i: (i, 0)),
            # Resident (D, N) bf16 positives: grid-invariant -> single buffer.
            pl.BlockSpec((d, n), lambda i: (0, 0),
                         pipeline_mode=pl.Buffered(1)),
            # Row labels for this tile.
            pl.BlockSpec((tm, 1), lambda i: (i, 0)),
            # Column labels: grid-invariant -> single buffer.
            pl.BlockSpec((1, n), lambda i: (0, 0),
                         pipeline_mode=pl.Buffered(1)),
        ],
        out_specs=pl.BlockSpec((tm, 1), lambda i: (i, 0)),
        compiler_params=pltpu.CompilerParams(
            dimension_semantics=("parallel",),
            vmem_limit_bytes=vmem_limit),
    )(a_p, bt_bf, labels_row, labels_col)

    # Epilogue in the wrapper: weight each row by -1/count_i (padded rows have
    # weight 0) and reduce.  Keeps the row-tile grid axis "parallel".
    return jnp.sum(neg_inv_p * per_row[:, 0])


def _reference_supcon(anchors, positives, labels, temperature=1.0):
    """Pure-JAX float32 reference replicating the PyTorch forward exactly."""
    a_norm = anchors / jnp.linalg.norm(anchors, axis=1, keepdims=True)
    b_norm = positives / jnp.linalg.norm(positives, axis=1, keepdims=True)
    dist = jnp.exp(a_norm @ b_norm.T / temperature)
    posf = (labels[:, None] == labels[None, :]).astype(jnp.float32)
    norm = -1.0 / jnp.sum(posf, axis=1)
    denom = jnp.sum(dist * (1.0 - posf), axis=1, keepdims=True)
    sms = jnp.sum(posf * jnp.log(dist / (dist + denom)), axis=1)
    return jnp.sum(norm * sms)


if __name__ == "__main__":
    key = jax.random.PRNGKey(0)
    k_a, k_p, k_l = jax.random.split(key, 3)

    N, D = 8, 32  # batch of 8 embeddings, hidden dim 32
    anchors = jax.random.normal(k_a, (N, D), dtype=jnp.float32)
    positives = jax.random.normal(k_p, (N, D), dtype=jnp.float32)
    labels = jax.random.randint(k_l, (N,), 0, 3, dtype=jnp.int32)

    loss = supcon_loss(anchors, positives, labels, temperature=1.0)
    loss = jax.block_until_ready(loss)

    ref = _reference_supcon(anchors, positives, labels, temperature=1.0)
    # bf16 MXU operands (and bf16 exp/log on v6e/v7x) -> loose tol vs f32 ref.
    assert jnp.allclose(loss, ref, rtol=2e-2, atol=2e-2), (loss, ref)

    print("KERNEL_OK")
</pallas_src>

<mosaic_0001>
module attributes {stable_mosaic.version = 11 : i64} {
  func.func @_supcon_tile_kernel(%arg0: i32, %arg1: memref<8x32xbf16, #tpu.memory_space<vmem>>, %arg2: memref<32x8xbf16, #tpu.memory_space<vmem>>, %arg3: memref<8x1xi32, #tpu.memory_space<vmem>>, %arg4: memref<1x8xi32, #tpu.memory_space<vmem>>, %arg5: memref<8x1xf32, #tpu.memory_space<vmem>>) attributes {dimension_semantics = [#tpu.dimension_semantics<parallel>], iteration_bounds = array<i64: 1>, scalar_prefetch = 0 : i64, scratch_operands = 0 : i64, tpu.core_type = #tpu.core_type<tc>, window_params = [{transform_indices = @transform_0, window_bounds = array<i64: 8, 32>}, {pipeline_mode = #tpu.pipeline_mode<synchronous>, transform_indices = @transform_1, window_bounds = array<i64: 32, 8>}, {transform_indices = @transform_2, window_bounds = array<i64: 8, 1>}, {pipeline_mode = #tpu.pipeline_mode<synchronous>, transform_indices = @transform_3, window_bounds = array<i64: 1, 8>}, {transform_indices = @transform_4, window_bounds = array<i64: 8, 1>}]} {
    %c0 = arith.constant 0 : index
    %c0_0 = arith.constant 0 : index
    %0 = vector.load %arg1[%c0, %c0_0] : memref<8x32xbf16, #tpu.memory_space<vmem>>, vector<8x32xbf16>
    %c0_1 = arith.constant 0 : index
    %c0_2 = arith.constant 0 : index
    %1 = vector.load %arg2[%c0_1, %c0_2] : memref<32x8xbf16, #tpu.memory_space<vmem>>, vector<32x8xbf16>
    %cst = arith.constant dense<0.000000e+00> : vector<8x8xf32>
    %2 = tpu.matmul %0, %1, %cst {dimension_numbers = #tpu.dot_dimension_numbers<[1], [0], [0], [1], [0, 0, 1, 1], [], []>} : vector<8x32xbf16>, vector<32x8xbf16>, vector<8x8xf32> -> vector<8x8xf32>
    %c0_3 = arith.constant 0 : index
    %c0_4 = arith.constant 0 : index
    %3 = vector.load %arg3[%c0_3, %c0_4] : memref<8x1xi32, #tpu.memory_space<vmem>>, vector<8x1xi32>
    %c0_5 = arith.constant 0 : index
    %c0_6 = arith.constant 0 : index
    %4 = vector.load %arg4[%c0_5, %c0_6] : memref<1x8xi32, #tpu.memory_space<vmem>>, vector<1x8xi32>
    %5 = vector.broadcast %3 : vector<8x1xi32> to vector<8x8xi32>
    %6 = vector.broadcast %4 : vector<1x8xi32> to vector<8x8xi32>
    %7 = arith.cmpi eq, %5, %6 : vector<8x8xi32>
    %cst_7 = arith.constant dense<0xFF800000> : vector<8xf32>
    %8 = vector.multi_reduction <maximumf>, %2, %cst_7 [1] : vector<8x8xf32> to vector<8xf32>
    %9 = vector.shape_cast %8 : vector<8xf32> to vector<8x1xf32>
    %10 = vector.broadcast %9 : vector<8x1xf32> to vector<8x8xf32>
    %11 = arith.subf %2, %10 : vector<8x8xf32>
    %12 = math.exp %11 : vector<8x8xf32>
    %cst_8 = arith.constant 0.000000e+00 : f32
    %13 = vector.broadcast %cst_8 : f32 to vector<8x8xf32>
    %14 = arith.select %7, %13, %12 : vector<8x8xi1>, vector<8x8xf32>
    %cst_9 = arith.constant dense<0.000000e+00> : vector<8xf32>
    %15 = vector.multi_reduction <add>, %14, %cst_9 [1] : vector<8x8xf32> to vector<8xf32>
    %16 = vector.shape_cast %15 : vector<8xf32> to vector<8x1xf32>
    %17 = vector.broadcast %16 : vector<8x1xf32> to vector<8x8xf32>
    %18 = arith.addf %12, %17 : vector<8x8xf32>
    %19 = math.log %18 : vector<8x8xf32>
    %20 = arith.subf %11, %19 : vector<8x8xf32>
    %cst_10 = arith.constant 0.000000e+00 : f32
    %21 = vector.broadcast %cst_10 : f32 to vector<8x8xf32>
    %22 = arith.select %7, %20, %21 : vector<8x8xi1>, vector<8x8xf32>
    %cst_11 = arith.constant dense<0.000000e+00> : vector<8xf32>
    %23 = vector.multi_reduction <add>, %22, %cst_11 [1] : vector<8x8xf32> to vector<8xf32>
    %24 = vector.shape_cast %23 : vector<8xf32> to vector<8x1xf32>
    %c0_12 = arith.constant 0 : index
    %c0_13 = arith.constant 0 : index
    %25 = vector.load %arg5[%c0_12, %c0_13] : memref<8x1xf32, #tpu.memory_space<vmem>>, vector<8x1xf32>
    tpu.vector_store %arg5[%c0_12, %c0_13], %24 {strides = array<i32>} : memref<8x1xf32, #tpu.memory_space<vmem>>, vector<8x1xf32>,
    return
  }
  func.func @transform_0(%arg0: i32) -> (i32, i32) {
    %c0_i32 = arith.constant 0 : i32
    %c0_i32_0 = arith.constant 0 : i32
    return %arg0, %c0_i32 : i32, i32
  }
  func.func @transform_1(%arg0: i32) -> (i32, i32) {
    %c0_i32 = arith.constant 0 : i32
    %c0_i32_0 = arith.constant 0 : i32
    %c0_i32_1 = arith.constant 0 : i32
    return %c0_i32, %c0_i32_0 : i32, i32
  }
  func.func @transform_2(%arg0: i32) -> (i32, i32) {
    %c0_i32 = arith.constant 0 : i32
    %c0_i32_0 = arith.constant 0 : i32
    return %arg0, %c0_i32 : i32, i32
  }
  func.func @transform_3(%arg0: i32) -> (i32, i32) {
    %c0_i32 = arith.constant 0 : i32
    %c0_i32_0 = arith.constant 0 : i32
    %c0_i32_1 = arith.constant 0 : i32
    return %c0_i32, %c0_i32_0 : i32, i32
  }
  func.func @transform_4(%arg0: i32) -> (i32, i32) {
    %c0_i32 = arith.constant 0 : i32
    %c0_i32_0 = arith.constant 0 : i32
    return %arg0, %c0_i32 : i32, i32
  }
}

</mosaic_0001>

<llo_original>
// kernel: tpu_custom_call.1
$region0: #{tpu_custom_call.1}
  #allocation0 [shape = 'u32[]', space=smem, size = 0x4, offset = 0x4, fixed_abs, tag = 'smem constant byte address 0x4 - core index']
  #allocation1 [shape = 'u32[144,128]{1,0:T(1,128)}', space=vmem, size = 0x12000, scoped, tag = 'internal scratch']
  %s0 = inlined_call_operand.vmem [shape: bf16[8,32], index: 0, kind: input, shape index: {}]
  %s1 = inlined_call_operand.vmem [shape: bf16[32,8], index: 1, kind: input, shape index: {}]
  %s2 = inlined_call_operand.vmem [shape: s32[8,1], index: 2, kind: input, shape index: {}]
  %s3 = inlined_call_operand.vmem [shape: s32[1,8], index: 3, kind: input, shape index: {}]
  %s4 = inlined_call_operand.vmem [shape: f32[8,1], index: 4, kind: output, shape index: {}]
  %s5 = sld [smem:[#allocation0]]
  $region26: #{tpu_custom_call.1} parent=0
    _
  %s7 = ssub.s32 1, %s5
  %s8 = scalar_select 0, %s7, %s5
  // Predicated region
  $region2: #{tpu_custom_call.1} parent=0 // pred_check
    _
  $region3: #{tpu_custom_call.1} parent=0 // pred_check_branch
    %10 = sbr.rel (0) target = $region5
  $region4: #{tpu_custom_call.1} parent=0 // pred_region
    _
  $region5: #{tpu_custom_call.1} parent=0 // pred_fallthru
    _
  // Predicated region
  $region6: #{tpu_custom_call.1} parent=0 // pred_check
    _
  $region7: #{tpu_custom_call.1} parent=0 // pred_check_branch
    %12 = sbr.rel (0) target = $region9
  $region8: #{tpu_custom_call.1} parent=0 // pred_region
    _
  $region9: #{tpu_custom_call.1} parent=0 // pred_fallthru
    _
  // Predicated region
  $region10: #{tpu_custom_call.1} parent=0 // pred_check
    _
  $region11: #{tpu_custom_call.1} parent=0 // pred_check_branch
    %14 = sbr.rel (0) target = $region13
  $region12: #{tpu_custom_call.1} parent=0 // pred_region
    _
  $region13: #{tpu_custom_call.1} parent=0 // pred_fallthru
    _
  // Predicated region
  $region14: #{tpu_custom_call.1} parent=0 // pred_check
    _
  $region15: #{tpu_custom_call.1} parent=0 // pred_check_branch
    %16 = sbr.rel (0) target = $region17
  $region16: #{tpu_custom_call.1} parent=0 // pred_region
    _
  $region17: #{tpu_custom_call.1} parent=0 // pred_fallthru
    _
  %v18 = vld [vmem:[%s0] sm:$0xf]
  %v19 = vld [vmem:[%s1] sm:$0xf]
  %v20 = vld [vmem:[%s1 + $0x4] sm:$0xf]
  %v21 = vld [vmem:[%s1 + $0x8] sm:$0xf]
  %v22 = vld [vmem:[%s1 + $0xc] sm:$0xf]
  %v27 = vunpack.c.l.b16 %v19
  %v28 = vunpack.c.l.b16 %v20
  %v29 = vunpack.c.l.b16 %v21
  %v30 = vunpack.c.l.b16 %v22
  %v31 = vpack.c.b16 %v28, %v27
  %v32 = vpack.c.b16 %v30, %v29
  %vm35 = vcmask 261120
  %v37 = vsel %vm35, %v18, 0
  %39 = vmatprep.subr.bf16.mxu0 0
  %40 = vmatpush1.bf16.msra.mxu0 0
  %41 = vmatprep.subr.bf16.mxu0 0
  %42 = vmatpush1.bf16.msra.mxu0 0
  %43 = vmatprep.subr.bf16.mxu0 0
  %44 = vmatpush1.bf16.msra.mxu0 0
  %45 = vmatprep.subr.bf16.mxu0 0
  %46 = vmatpush1.bf16.msra.mxu0 0
  %47 = vmatprep.subr.bf16.mxu0 0
  %48 = vmatpush1.bf16.msra.mxu0 0
  %49 = vmatprep.subr.bf16.mxu0 0
  %50 = vmatpush1.bf16.msra.mxu0 0
  %51 = vmatprep.subr.bf16.mxu0 0
  %52 = vmatpush1.bf16.msra.mxu0 %v32
  %53 = vmatprep.subr.bf16.mxu0 0
  %54 = vmatpush1.bf16.msra.mxu0 %v31
  %55 = vmatprep.subr.bf16.mxu0 0
  %56 = vmatpush2.bf16.msra.mxu0 0
  %57 = vmatprep.subr.bf16.mxu0 0
  %58 = vmatpush2.bf16.msra.mxu0 0
  %59 = vmatprep.subr.bf16.mxu0 0
  %60 = vmatpush2.bf16.msra.mxu0 0
  %61 = vmatprep.subr.bf16.mxu0 0
  %62 = vmatpush2.bf16.msra.mxu0 0
  %63 = vmatprep.subr.bf16.mxu0 0
  %64 = vmatpush2.bf16.msra.mxu0 0
  %65 = vmatprep.subr.bf16.mxu0 0
  %66 = vmatpush2.bf16.msra.mxu0 0
  %67 = vmatprep.subr.bf16.mxu0 0
  %68 = vmatpush2.bf16.msra.mxu0 0
  %69 = vmatprep.subr.bf16.mxu0 0
  %70 = vmatpush2.bf16.msra.mxu0 0
  %71 = vmatprep.mubr.bf16.mxu0 0
  %72 = vmatmul.mubr.bf16.gmra.mxu0 %v37
  %v73 = vpop.f32.mrf.mxu0
  %v74 = vadd.f32 0.0, %v73
  %v75 = vpop.f32.mrf.mxu0
  %v76 = vpop.f32.mrf.mxu0
  %v77 = vpop.f32.mrf.mxu0
  %78 = vdwg.mxu0
  %v79 = vld [vmem:[%s2] sm:$0xff]
  %v80 = vld [vmem:[%s3] sm:$0x1]
  %81 = vset.pattern.permute.xlu0 0
  %82 = vperm.xlu0 %81, %v79
  %v83 = vpop.permute.xlu0 %82
  %v84 = vlaneseq
  %v85 = vshrl.u32 %v84, 7
  %v86 = vsub.s32 0, %v85
  %v87 = vrot.slane %v80, %v86
  %vm88 = vcmp.eq.s32.totalorder %v83, %v87
  %vm89 = vcmask 64512
  %v90 = vsel %vm89, %v74, -inf
  %91 = vmax.xlane.f32.xlu0 %v90
  %v92 = vpop.xlane.xlu0 %91
  %v93 = vsub.f32 %v74, %v92
  %v94 = vmul.f32 %v93, 1.442695
  %v95 = vpow.pop %v94
  %v96 = vsel %vm88, 0.0, %v95
  %v97 = vsel %vm89, %v96, 0.0
  %98 = vadd.xlane.f32.xlu0 %v97
  %v99 = vpop.xlane.xlu0 %98
  %v100 = vadd.f32 %v95, %v99
  %v101 = vlog2.pop %v100
  %v102 = vmul.f32 %v101, 0.6931472
  %v103 = vsub.f32 %v93, %v102
  %v104 = vsel %vm88, %v103, 0.0
  %v105 = vsel %vm89, %v104, 0.0
  %106 = vadd.xlane.f32.xlu0 %v105
  %v107 = vpop.xlane.xlu0 %106
  %vm108 = vcmask 7168
  %109 = vst.msk [vmem:[%s4] sm:$0xff] %vm108, %v107
  // Predicated region
  $region18: #{tpu_custom_call.1} parent=0 // pred_check
    _
  $region19: #{tpu_custom_call.1} parent=0 // pred_check_branch
    %111 = sbr.rel (0) target = $region21
  $region20: #{tpu_custom_call.1} parent=0 // pred_region
    _
  $region21: #{tpu_custom_call.1} parent=0 // pred_fallthru
    _
  // Predicated region
  $region22: #{tpu_custom_call.1} parent=0 // pred_check
    _
  $region23: #{tpu_custom_call.1} parent=0 // pred_check_branch
    %113 = sbr.rel (0) target = $region25
  $region24: #{tpu_custom_call.1} parent=0 // pred_region
    _
  $region25: #{tpu_custom_call.1} parent=0 // pred_fallthru
    _

</llo_original>
